<compile_context>
chip_gen: v6e
topology: v6e:2x2x1
jax: 0.10.0
libtpu: 0.0.40
codegen_flags: <defaults>
</compile_context>

<pallas_src>
import math
import numpy as np
import jax
import jax.numpy as jnp
from jax.experimental import pallas as pl
from jax.experimental.pallas import tpu as pltpu


# --------------------------------------------------------------------------- helpers
def _vmem_capacity_bytes():
    """Generation-aware VMEM capacity (64 MiB on v7x, 128 MiB on v5e/v6e)."""
    try:
        return int(pltpu.get_tpu_info().vmem_capacity_bytes)
    except Exception:
        return 64 * 1024 * 1024   # conservative fallback (v7x per-TC VMEM)


def _pool_matrix(Hs, Ws, dim):
    """Per-channel adaptive-avg-pool matrix P (Hs*Ws, dim*dim):
    x[c].reshape(-1) @ P == AdaptiveAvgPool2d(dim)(x)[c].reshape(-1)."""
    P = np.zeros((Hs * Ws, dim * dim), dtype=np.float32)
    for i in range(dim):
        h0 = (i * Hs) // dim
        h1 = -((-(i + 1) * Hs) // dim)           # ceil((i+1)*Hs/dim)
        for j in range(dim):
            w0 = (j * Ws) // dim
            w1 = -((-(j + 1) * Ws) // dim)
            area = float((h1 - h0) * (w1 - w0))
            col = i * dim + j
            for h in range(h0, h1):
                for w in range(w0, w1):
                    P[h * Ws + w, col] = 1.0 / area
    return P


def _pick_bn(n_rows, per_row_bytes, resident_bytes, vmem_cap):
    """Batch tile rows: bounded by ~half of VMEM (double-buffered in/out + resident
    operands), multiple of 8, <= 1024; for N > 8 guarantee >= 2 grid steps (megacore)."""
    budget = int(vmem_cap * 0.5) - int(resident_bytes)
    budget = max(budget, int(per_row_bytes) * 8)
    bn = budget // max(int(per_row_bytes), 1)
    bn = int(max(8, min(1024, (bn // 8) * 8)))
    if n_rows > 8:
        half = -(-n_rows // 2)                   # ceil(N/2)
        half8 = -(-half // 8) * 8                # rounded up to 8 rows
        bn = max(8, min(bn, half8))              # => pl.cdiv(N, bn) >= 2
    if bn >= n_rows:
        bn = n_rows                              # single full block (no ragged read)
    return bn


# --------------------------------------------------------------------------- kernels
def _make_pool_softmax_kernel(mxu_dtype):
    """Block-diagonal pooling dot -> one softmax -> one conv dot."""
    def kernel(x_ref, pm_ref, w_ref, b_ref, o_ref):
        xt = x_ref[...].astype(mxu_dtype)                               # per-tile cast (VPU)
        flat = jnp.dot(xt, pm_ref[...], preferred_element_type=jnp.float32)   # (bn, H) f32
        m = flat.max(axis=1, keepdims=True)
        e = jnp.exp(flat - m)
        p = e * pl.reciprocal(e.sum(axis=1, keepdims=True), approx=True)      # EUP slot
        o_ref[...] = (jnp.dot(p.astype(mxu_dtype), w_ref[...],
                              preferred_element_type=jnp.float32) + b_ref[...])
    return kernel


def _make_perchannel_kernel(do_softmax, C, S, P, mxu_dtype):
    """Fallback for very large H: C small pooling dots written contiguously into a
    (bn, H) VMEM scratch, then ONE softmax and ONE conv dot."""
    def kernel(x_ref, pm_ref, w_ref, b_ref, o_ref, pooled_ref):
        pm = pm_ref[...]                                                # (S, P)
        for c in range(C):                                              # static -> unrolled
            xc = x_ref[:, c * S:(c + 1) * S].astype(mxu_dtype)
            pooled_ref[:, c * P:(c + 1) * P] = jnp.dot(
                xc, pm, preferred_element_type=jnp.float32)
        flat = pooled_ref[...]
        if do_softmax:
            m = flat.max(axis=1, keepdims=True)
            e = jnp.exp(flat - m)
            flat = e * pl.reciprocal(e.sum(axis=1, keepdims=True), approx=True)
        o_ref[...] = (jnp.dot(flat.astype(mxu_dtype), w_ref[...],
                              preferred_element_type=jnp.float32) + b_ref[...])
    return kernel


def _make_gemm_kernel(do_softmax, mxu_dtype):
    """x (optionally softmaxed) @ W + b.  Used for the Ws == 1 branch and for the
    do_softmax == 0 pooling branch (pooling folded into W on the host)."""
    def kernel(x_ref, w_ref, b_ref, o_ref):
        if do_softmax:
            flat = x_ref[...].astype(jnp.float32)
            m = flat.max(axis=1, keepdims=True)
            e = jnp.exp(flat - m)
            flat = (e * pl.reciprocal(e.sum(axis=1, keepdims=True),
                                      approx=True)).astype(mxu_dtype)
        else:
            flat = x_ref[...].astype(mxu_dtype)
        o_ref[...] = (jnp.dot(flat, w_ref[...],
                              preferred_element_type=jnp.float32) + b_ref[...])
    return kernel


# --------------------------------------------------------------------------- module
class MaskPredictorNN:
    """JAX/Pallas port of the PyTorch MaskPredictorNN (deterministic synthetic params)."""

    def __init__(self, in_features, out_features, target, nclass, ratio, do_softmax, key,
                 compute_dtype=jnp.bfloat16):
        self.in_features = in_features
        self.out_features = out_features
        self.ratio = ratio
        self.nclass = nclass
        self.dim = 1 if target == -1 else round(math.sqrt(target / in_features))
        assert self.dim >= 1, "target too small for in_features (dim rounds to 0)"
        self.P = self.dim * self.dim
        self.H = self.P * in_features
        self.do_softmax = (do_softmax == 1)
        # MXU operand dtype: bf16 by default (v6e/v7x recommendation, f32 accumulation);
        # pass jnp.float32 for strict parity with the PyTorch reference.
        self.compute_dtype = jnp.dtype(compute_dtype)
        self.out_pad = -(-out_features // 128) * 128          # lane-dense output width

        # Conv2d(H, out_features, 1, bias=True); PyTorch default init U(-1/sqrt(H), 1/sqrt(H)).
        kw, kb = jax.random.split(key)
        bound = 1.0 / math.sqrt(self.H)
        self.weight = jax.random.uniform(
            kw, (out_features, self.H, 1, 1), minval=-bound, maxval=bound, dtype=jnp.float32)
        self.bias = jax.random.uniform(
            kb, (out_features,), minval=-bound, maxval=bound, dtype=jnp.float32)

        # Lane-padded, device-resident conv params (built once, not per call).
        w2 = jnp.transpose(self.weight.reshape(out_features, self.H))           # (H, OUT)
        self._w2_pad_f32 = (jnp.zeros((self.H, self.out_pad), jnp.float32)
                            .at[:, :out_features].set(w2))
        self._w2_pad = self._w2_pad_f32.astype(self.compute_dtype)              # MXU operand
        self._b_pad = (jnp.zeros((1, self.out_pad), jnp.float32)
                       .at[0, :out_features].set(self.bias))

        self._vmem_cap = _vmem_capacity_bytes()
        self._vmem_limit = int(self._vmem_cap * 3 // 4)
        self._pool_cache = {}     # pooling operands / folded weights per spatial shape
        self._runner_cache = {}   # (N, Hs, Ws, x_dtype) -> callable

    # ------------------------------------------------------------------ runners
    def _compiler_params(self):
        return pltpu.CompilerParams(
            dimension_semantics=("parallel",),        # batch tiles shard across TCs (v7x)
            vmem_limit_bytes=self._vmem_limit)

    def _get_runner(self, N, C, Hs, Ws, x_dtype):
        key = (N, Hs, Ws, jnp.dtype(x_dtype).name)
        if key in self._runner_cache:
            return self._runner_cache[key]

        cdt = self.compute_dtype
        OUT, OUTp = self.out_features, self.out_pad
        K = C * Hs * Ws
        x_bytes = jnp.dtype(x_dtype).itemsize
        cparams = self._compiler_params()

        if Ws > 1:  # AdaptiveAvgPool2d branch
            S = Hs * Ws
            if self.do_softmax:
                # Block-diagonal pooling whenever H is MXU-friendly and the matrix fits
                # comfortably in VMEM; otherwise per-channel dots into a VMEM scratch.
                use_bd = (self.H <= 512) and (K * self.H * cdt.itemsize <= (8 << 20))
                ck = (Hs, Ws, "bd" if use_bd else "pc")
                if ck not in self._pool_cache:
                    pm_small = _pool_matrix(Hs, Ws, self.dim)
                    pm_np = (np.kron(np.eye(C, dtype=np.float32), pm_small)
                             if use_bd else pm_small)
                    self._pool_cache[ck] = jnp.asarray(pm_np, dtype=cdt)
                pm = self._pool_cache[ck]

                resident = 2 * (pm.size * cdt.itemsize
                                + self.H * OUTp * cdt.itemsize + OUTp * 4)
                per_row = 2 * K * x_bytes + 2 * OUTp * 4 + (0 if use_bd else self.H * 4)
                bn = _pick_bn(N, per_row, resident, self._vmem_cap)
                grid = (pl.cdiv(N, bn),)

                if use_bd:
                    kernel = _make_pool_softmax_kernel(cdt)
                    in_specs = [
                        pl.BlockSpec((bn, K), lambda i: (i, 0)),            # batch-tiled x
                        pl.BlockSpec((K, self.H), lambda i: (0, 0)),        # resident pool mat
                        pl.BlockSpec((self.H, OUTp), lambda i: (0, 0)),     # resident W
                        pl.BlockSpec((1, OUTp), lambda i: (0, 0)),          # resident bias
                    ]
                    scratch = []
                else:
                    kernel = _make_perchannel_kernel(True, C, S, self.P, cdt)
                    in_specs = [
                        pl.BlockSpec((bn, K), lambda i: (i, 0)),
                        pl.BlockSpec((S, self.P), lambda i: (0, 0)),
                        pl.BlockSpec((self.H, OUTp), lambda i: (0, 0)),
                        pl.BlockSpec((1, OUTp), lambda i: (0, 0)),
                    ]
                    scratch = [pltpu.VMEM((bn, self.H), jnp.float32)]

                call = pl.pallas_call(
                    kernel,
                    out_shape=jax.ShapeDtypeStruct((N, OUTp), jnp.float32),
                    grid_spec=pltpu.PrefetchScalarGridSpec(
                        num_scalar_prefetch=0, grid=grid,
                        in_specs=in_specs,
                        out_specs=pl.BlockSpec((bn, OUTp), lambda i: (i, 0)),
                        scratch_shapes=scratch),
                    compiler_params=cparams)

                def run(x4, pm_, w_, b_):
                    out = call(x4.reshape(N, K), pm_, w_, b_)   # no pad, no extra cast pass
                    return out[:, :OUT].reshape(N, OUT, 1, 1)

                jrun = jax.jit(run)
                fn = lambda x4: jrun(x4, pm, self._w2_pad, self._b_pad)

            else:
                # Softmax disabled: fold pooling into the conv weights on the host
                # -> kernel is a single (bn,K)@(K,OUTp) GEMM + bias.
                ck = (Hs, Ws, "folded")
                if ck not in self._pool_cache:
                    pm_small = _pool_matrix(Hs, Ws, self.dim)
                    pm_bd = jnp.asarray(np.kron(np.eye(C, dtype=np.float32), pm_small))
                    self._pool_cache[ck] = (pm_bd @ self._w2_pad_f32).astype(cdt)  # (K, OUTp)
                weff = self._pool_cache[ck]

                resident = 2 * (K * OUTp * cdt.itemsize + OUTp * 4)
                per_row = 2 * K * x_bytes + 2 * OUTp * 4
                bn = _pick_bn(N, per_row, resident, self._vmem_cap)

                call = pl.pallas_call(
                    _make_gemm_kernel(False, cdt),
                    out_shape=jax.ShapeDtypeStruct((N, OUTp), jnp.float32),
                    grid_spec=pltpu.PrefetchScalarGridSpec(
                        num_scalar_prefetch=0, grid=(pl.cdiv(N, bn),),
                        in_specs=[
                            pl.BlockSpec((bn, K), lambda i: (i, 0)),
                            pl.BlockSpec((K, OUTp), lambda i: (0, 0)),
                            pl.BlockSpec((1, OUTp), lambda i: (0, 0)),
                        ],
                        out_specs=pl.BlockSpec((bn, OUTp), lambda i: (i, 0))),
                    compiler_params=cparams)

                def run(x4, w_, b_):
                    out = call(x4.reshape(N, K), w_, b_)
                    return out[:, :OUT].reshape(N, OUT, 1, 1)

                jrun = jax.jit(run)
                fn = lambda x4: jrun(x4, weff, self._b_pad)

        else:
            # Ws == 1: AdaptiveNormalize is just a reshape; (softmax) + 1x1 conv only.
            assert K == self.H, "W==1 path requires C*H*W == conv in-channels"
            resident = 2 * (self.H * OUTp * cdt.itemsize + OUTp * 4)
            per_row = 2 * K * x_bytes + 2 * OUTp * 4
            bn = _pick_bn(N, per_row, resident, self._vmem_cap)

            call = pl.pallas_call(
                _make_gemm_kernel(self.do_softmax, cdt),
                out_shape=jax.ShapeDtypeStruct((N, OUTp), jnp.float32),
                grid_spec=pltpu.PrefetchScalarGridSpec(
                    num_scalar_prefetch=0, grid=(pl.cdiv(N, bn),),
                    in_specs=[
                        pl.BlockSpec((bn, K), lambda i: (i, 0)),
                        pl.BlockSpec((self.H, OUTp), lambda i: (0, 0)),
                        pl.BlockSpec((1, OUTp), lambda i: (0, 0)),
                    ],
                    out_specs=pl.BlockSpec((bn, OUTp), lambda i: (i, 0))),
                compiler_params=cparams)

            def run(x4, w_, b_):
                out = call(x4.reshape(N, K), w_, b_)
                return out[:, :OUT].reshape(N, OUT, 1, 1)

            jrun = jax.jit(run)
            fn = lambda x4: jrun(x4, self._w2_pad, self._b_pad)

        self._runner_cache[key] = fn
        return fn

    def __call__(self, x):
        N, C, Hs, Ws = x.shape
        assert C == self.in_features
        # Note: GP = input.norm(p=2, dim=(2,3)) in the reference AdaptiveNormalize is
        # dead code (never returned) and is intentionally dropped.
        return self._get_runner(N, C, Hs, Ws, x.dtype)(x)


# ---------------------------------------------------------------------- reference
def _reference_numpy(x, weight, bias, dim, do_softmax):
    x = np.asarray(x, dtype=np.float64)
    N, C, Hs, Ws = x.shape
    if x.ndim > 2 and Ws > 1:
        pooled = np.zeros((N, C, dim, dim), dtype=np.float64)
        for i in range(dim):
            h0 = (i * Hs) // dim
            h1 = -((-(i + 1) * Hs) // dim)
            for j in range(dim):
                w0 = (j * Ws) // dim
                w1 = -((-(j + 1) * Ws) // dim)
                pooled[:, :, i, j] = x[:, :, h0:h1, w0:w1].mean(axis=(2, 3))
        flat = pooled.reshape(N, -1)
    else:
        flat = x.reshape(N, -1)
    if do_softmax:
        m = flat.max(axis=1, keepdims=True)
        e = np.exp(flat - m)
        flat = e / e.sum(axis=1, keepdims=True)
    W2 = np.asarray(weight, dtype=np.float64).reshape(weight.shape[0], -1)
    return flat @ W2.T + np.asarray(bias, dtype=np.float64)[None, :]


if __name__ == "__main__":
    key = jax.random.PRNGKey(0)
    k_in, k_param, k_in2, k_in3 = jax.random.split(key, 4)

    # in_features=4, spatial=16x16, target=16 -> dim=2, H=16, out_features=32.
    N, C, Hs, Ws = 2, 4, 16, 16
    target, out_features = 16, 32
    x = jax.random.normal(k_in, (N, C, Hs, Ws), dtype=jnp.float32)

    # (1) f32 MXU path, do_softmax=1 (tight tolerance; approx EUP reciprocal ~1e-3).
    model = MaskPredictorNN(in_features=C, out_features=out_features, target=target,
                            nclass=10, ratio=0.5, do_softmax=1, key=k_param,
                            compute_dtype=jnp.float32)
    y = model(x)
    jax.block_until_ready(y)
    assert y.shape == (N, out_features, 1, 1)
    y_ref = _reference_numpy(np.asarray(x), np.asarray(model.weight),
                             np.asarray(model.bias), model.dim, True)
    np.testing.assert_allclose(np.asarray(y).reshape(N, out_features), y_ref,
                               rtol=5e-3, atol=2e-3)

    # (1b) Ragged multi-step grid (N=13 -> 2 batch tiles, partial last block); exercises
    #      the no-pad wrapper and the 'parallel' megacore split.
    x13 = jax.random.normal(k_in3, (13, C, Hs, Ws), dtype=jnp.float32)
    y13 = model(x13)
    jax.block_until_ready(y13)
    y13_ref = _reference_numpy(np.asarray(x13), np.asarray(model.weight),
                               np.asarray(model.bias), model.dim, True)
    np.testing.assert_allclose(np.asarray(y13).reshape(13, out_features), y13_ref,
                               rtol=5e-3, atol=2e-3)

    # (2) Default bf16 MXU-operand path (v6e/v7x recommendation), looser tolerance.
    model_bf16 = MaskPredictorNN(in_features=C, out_features=out_features, target=target,
                                 nclass=10, ratio=0.5, do_softmax=1, key=k_param)
    y16 = model_bf16(x)
    jax.block_until_ready(y16)
    np.testing.assert_allclose(np.asarray(y16).reshape(N, out_features), y_ref,
                               rtol=3e-2, atol=1e-2)

    # (3) do_softmax == 0: pooling folded into conv weights -> single GEMM kernel.
    model_ns = MaskPredictorNN(in_features=C, out_features=out_features, target=target,
                               nclass=10, ratio=0.5, do_softmax=0, key=k_param,
                               compute_dtype=jnp.float32)
    yns = model_ns(x)
    jax.block_until_ready(yns)
    yns_ref = _reference_numpy(np.asarray(x), np.asarray(model_ns.weight),
                               np.asarray(model_ns.bias), model_ns.dim, False)
    np.testing.assert_allclose(np.asarray(yns).reshape(N, out_features), yns_ref,
                               rtol=5e-3, atol=2e-3)

    # (4) W == 1 branch (target=-1 -> dim=1): AdaptiveNormalize skips pooling entirely.
    model_flat = MaskPredictorNN(in_features=C, out_features=out_features, target=-1,
                                 nclass=10, ratio=0.5, do_softmax=1, key=k_param,
                                 compute_dtype=jnp.float32)
    x1 = jax.random.normal(k_in2, (N, C, 1, 1), dtype=jnp.float32)
    y1 = model_flat(x1)
    jax.block_until_ready(y1)
    y1_ref = _reference_numpy(np.asarray(x1), np.asarray(model_flat.weight),
                              np.asarray(model_flat.bias), model_flat.dim, True)
    np.testing.assert_allclose(np.asarray(y1).reshape(N, out_features), y1_ref,
                               rtol=5e-3, atol=2e-3)

    print("KERNEL_OK")
</pallas_src>

<mosaic_0001>
module attributes {stable_mosaic.version = 11 : i64} {
  func.func @kernel(%arg0: i32, %arg1: memref<2x1024xf32, #tpu.memory_space<vmem>>, %arg2: memref<1024x16xf32, #tpu.memory_space<vmem>>, %arg3: memref<16x128xf32, #tpu.memory_space<vmem>>, %arg4: memref<1x128xf32, #tpu.memory_space<vmem>>, %arg5: memref<2x128xf32, #tpu.memory_space<vmem>>) attributes {dimension_semantics = [#tpu.dimension_semantics<parallel>], iteration_bounds = array<i64: 1>, scalar_prefetch = 0 : i64, scratch_operands = 0 : i64, tpu.core_type = #tpu.core_type<tc>, window_params = [{transform_indices = @transform_0, window_bounds = array<i64: 2, 1024>}, {pipeline_mode = #tpu.pipeline_mode<synchronous>, transform_indices = @transform_1, window_bounds = array<i64: 1024, 16>}, {pipeline_mode = #tpu.pipeline_mode<synchronous>, transform_indices = @transform_2, window_bounds = array<i64: 16, 128>}, {pipeline_mode = #tpu.pipeline_mode<synchronous>, transform_indices = @transform_3, window_bounds = array<i64: 1, 128>}, {transform_indices = @transform_4, window_bounds = array<i64: 2, 128>}]} {
    %c0 = arith.constant 0 : index
    %c0_0 = arith.constant 0 : index
    %0 = vector.load %arg1[%c0, %c0_0] : memref<2x1024xf32, #tpu.memory_space<vmem>>, vector<2x1024xf32>
    %c0_1 = arith.constant 0 : index
    %c0_2 = arith.constant 0 : index
    %1 = vector.load %arg2[%c0_1, %c0_2] : memref<1024x16xf32, #tpu.memory_space<vmem>>, vector<1024x16xf32>
    %cst = arith.constant dense<0.000000e+00> : vector<2x16xf32>
    %2 = tpu.matmul %0, %1, %cst {dimension_numbers = #tpu.dot_dimension_numbers<[1], [0], [0], [1], [0, 0, 1, 1], [], []>} : vector<2x1024xf32>, vector<1024x16xf32>, vector<2x16xf32> -> vector<2x16xf32>
    %cst_3 = arith.constant dense<0xFF800000> : vector<2xf32>
    %3 = vector.multi_reduction <maximumf>, %2, %cst_3 [1] : vector<2x16xf32> to vector<2xf32>
    %4 = vector.shape_cast %3 : vector<2xf32> to vector<2x1xf32>
    %5 = vector.broadcast %4 : vector<2x1xf32> to vector<2x16xf32>
    %6 = arith.subf %2, %5 : vector<2x16xf32>
    %7 = math.exp %6 : vector<2x16xf32>
    %cst_4 = arith.constant dense<0.000000e+00> : vector<2xf32>
    %8 = vector.multi_reduction <add>, %7, %cst_4 [1] : vector<2x16xf32> to vector<2xf32>
    %9 = vector.shape_cast %8 : vector<2xf32> to vector<2x1xf32>
    %10 = tpu.reciprocal %9 {approx = true} : vector<2x1xf32> -> vector<2x1xf32>
    %11 = vector.broadcast %10 : vector<2x1xf32> to vector<2x16xf32>
    %12 = arith.mulf %7, %11 : vector<2x16xf32>
    %c0_5 = arith.constant 0 : index
    %c0_6 = arith.constant 0 : index
    %13 = vector.load %arg3[%c0_5, %c0_6] : memref<16x128xf32, #tpu.memory_space<vmem>>, vector<16x128xf32>
    %cst_7 = arith.constant dense<0.000000e+00> : vector<2x128xf32>
    %14 = tpu.matmul %12, %13, %cst_7 {dimension_numbers = #tpu.dot_dimension_numbers<[1], [0], [0], [1], [0, 0, 1, 1], [], []>} : vector<2x16xf32>, vector<16x128xf32>, vector<2x128xf32> -> vector<2x128xf32>
    %c0_8 = arith.constant 0 : index
    %c0_9 = arith.constant 0 : index
    %15 = vector.load %arg4[%c0_8, %c0_9] : memref<1x128xf32, #tpu.memory_space<vmem>>, vector<1x128xf32>
    %16 = vector.broadcast %15 : vector<1x128xf32> to vector<2x128xf32>
    %17 = arith.addf %14, %16 : vector<2x128xf32>
    %c0_10 = arith.constant 0 : index
    %c0_11 = arith.constant 0 : index
    %18 = vector.load %arg5[%c0_10, %c0_11] : memref<2x128xf32, #tpu.memory_space<vmem>>, vector<2x128xf32>
    tpu.vector_store %arg5[%c0_10, %c0_11], %17 {strides = array<i32>} : memref<2x128xf32, #tpu.memory_space<vmem>>, vector<2x128xf32>,
    return
  }
  func.func @transform_0(%arg0: i32) -> (i32, i32) {
    %c0_i32 = arith.constant 0 : i32
    %c0_i32_0 = arith.constant 0 : i32
    return %arg0, %c0_i32 : i32, i32
  }
  func.func @transform_1(%arg0: i32) -> (i32, i32) {
    %c0_i32 = arith.constant 0 : i32
    %c0_i32_0 = arith.constant 0 : i32
    %c0_i32_1 = arith.constant 0 : i32
    return %c0_i32, %c0_i32_0 : i32, i32
  }
  func.func @transform_2(%arg0: i32) -> (i32, i32) {
    %c0_i32 = arith.constant 0 : i32
    %c0_i32_0 = arith.constant 0 : i32
    %c0_i32_1 = arith.constant 0 : i32
    return %c0_i32, %c0_i32_0 : i32, i32
  }
  func.func @transform_3(%arg0: i32) -> (i32, i32) {
    %c0_i32 = arith.constant 0 : i32
    %c0_i32_0 = arith.constant 0 : i32
    %c0_i32_1 = arith.constant 0 : i32
    return %c0_i32, %c0_i32_0 : i32, i32
  }
  func.func @transform_4(%arg0: i32) -> (i32, i32) {
    %c0_i32 = arith.constant 0 : i32
    %c0_i32_0 = arith.constant 0 : i32
    return %arg0, %c0_i32 : i32, i32
  }
}

</mosaic_0001>

<llo_original>
// kernel: run.1
$region0: #{run.1}
  #allocation0 [shape = 'u32[]', space=smem, size = 0x4, offset = 0x4, fixed_abs, tag = 'smem constant byte address 0x4 - core index']
  #allocation1 [shape = 'u32[144,128]{1,0:T(1,128)}', space=vmem, size = 0x12000, scoped, tag = 'internal scratch']
  %s0 = inlined_call_operand.vmem [shape: f32[2,1024], index: 0, kind: input, shape index: {}]
  %s1 = inlined_call_operand.vmem [shape: f32[1024,16], index: 1, kind: input, shape index: {}]
  %s2 = inlined_call_operand.vmem [shape: f32[16,128], index: 2, kind: input, shape index: {}]
  %s3 = inlined_call_operand.vmem [shape: f32[1,128], index: 3, kind: input, shape index: {}]
  %s4 = inlined_call_operand.hbm [shape: f32[2,128], index: 4, kind: output, shape index: {}]
  %s5 = sld [smem:[#allocation0]]
  $region26: #{run.1} parent=0
    _
  %s7 = ssub.s32 1, %s5
  %s8 = scalar_select 0, %s7, %s5
  $region1: #{run.1} parent=0
    #allocation2 [shape = 'u8[1024]{0}', space=vmem, size = 0x400, scoped, tag = 'output window, operand 0, single buffered']
    #allocation3 [shape = 's32[1]{0}', space=sflag, size = 0x4, scoped, tag = 'scoped memory for run.1']
    %9 = vsyncpa [#allocation3], 0
    // Predicated region
    $region2: #{run.1} parent=1 // pred_check
      _
    $region3: #{run.1} parent=1 // pred_check_branch
      %11 = sbr.rel (0) target = $region5
    $region4: #{run.1} parent=1 // pred_region
      _
    $region5: #{run.1} parent=1 // pred_fallthru
      _
    // Predicated region
    $region6: #{run.1} parent=1 // pred_check
      _
    $region7: #{run.1} parent=1 // pred_check_branch
      %13 = sbr.rel (0) target = $region9
    $region8: #{run.1} parent=1 // pred_region
      _
    $region9: #{run.1} parent=1 // pred_fallthru
      _
    // Predicated region
    $region10: #{run.1} parent=1 // pred_check
      _
    $region11: #{run.1} parent=1 // pred_check_branch
      %15 = sbr.rel (0) target = $region13
    $region12: #{run.1} parent=1 // pred_region
      _
    $region13: #{run.1} parent=1 // pred_fallthru
      _
    // Predicated region
    $region14: #{run.1} parent=1 // pred_check
      _
    $region15: #{run.1} parent=1 // pred_check_branch
      %17 = sbr.rel (0) target = $region17
    $region16: #{run.1} parent=1 // pred_region
      _
    $region17: #{run.1} parent=1 // pred_fallthru
      _
    %v18 = vld [vmem:[%s0] sm:$0xff]
    %v19 = vld [vmem:[%s0 + $0x8] sm:$0xff]
    %v20 = vld [vmem:[%s1] sm:$0xff]
    %v21 = vld [vmem:[%s1 + $0x8] sm:$0xff]
    %v22 = vld [vmem:[%s1 + $0x10] sm:$0xff]
    %v23 = vld [vmem:[%s1 + $0x18] sm:$0xff]
    %v24 = vld [vmem:[%s1 + $0x20] sm:$0xff]
    %v25 = vld [vmem:[%s1 + $0x28] sm:$0xff]
    %v26 = vld [vmem:[%s1 + $0x30] sm:$0xff]
    %v27 = vld [vmem:[%s1 + $0x38] sm:$0xff]
    %v28 = vld [vmem:[%s1 + $0x40] sm:$0xff]
    %v29 = vld [vmem:[%s1 + $0x48] sm:$0xff]
    %v30 = vld [vmem:[%s1 + $0x50] sm:$0xff]
    %v31 = vld [vmem:[%s1 + $0x58] sm:$0xff]
    %v32 = vld [vmem:[%s1 + $0x60] sm:$0xff]
    %v33 = vld [vmem:[%s1 + $0x68] sm:$0xff]
    %v34 = vld [vmem:[%s1 + $0x70] sm:$0xff]
    %v35 = vld [vmem:[%s1 + $0x78] sm:$0xff]
    %v36 = vld [vmem:[%s1 + $0x80] sm:$0xff]
    %v37 = vld [vmem:[%s1 + $0x88] sm:$0xff]
    %v38 = vld [vmem:[%s1 + $0x90] sm:$0xff]
    %v39 = vld [vmem:[%s1 + $0x98] sm:$0xff]
    %v40 = vld [vmem:[%s1 + $0xa0] sm:$0xff]
    %v41 = vld [vmem:[%s1 + $0xa8] sm:$0xff]
    %v42 = vld [vmem:[%s1 + $0xb0] sm:$0xff]
    %v43 = vld [vmem:[%s1 + $0xb8] sm:$0xff]
    %v44 = vld [vmem:[%s1 + $0xc0] sm:$0xff]
    %v45 = vld [vmem:[%s1 + $0xc8] sm:$0xff]
    %v46 = vld [vmem:[%s1 + $0xd0] sm:$0xff]
    %v47 = vld [vmem:[%s1 + $0xd8] sm:$0xff]
    %v48 = vld [vmem:[%s1 + $0xe0] sm:$0xff]
    %v49 = vld [vmem:[%s1 + $0xe8] sm:$0xff]
    %v50 = vld [vmem:[%s1 + $0xf0] sm:$0xff]
    %v51 = vld [vmem:[%s1 + $0xf8] sm:$0xff]
    %v52 = vld [vmem:[%s1 + $0x100] sm:$0xff]
    %v53 = vld [vmem:[%s1 + $0x108] sm:$0xff]
    %v54 = vld [vmem:[%s1 + $0x110] sm:$0xff]
    %v55 = vld [vmem:[%s1 + $0x118] sm:$0xff]
    %v56 = vld [vmem:[%s1 + $0x120] sm:$0xff]
    %v57 = vld [vmem:[%s1 + $0x128] sm:$0xff]
    %v58 = vld [vmem:[%s1 + $0x130] sm:$0xff]
    %v59 = vld [vmem:[%s1 + $0x138] sm:$0xff]
    %v60 = vld [vmem:[%s1 + $0x140] sm:$0xff]
    %v61 = vld [vmem:[%s1 + $0x148] sm:$0xff]
    %v62 = vld [vmem:[%s1 + $0x150] sm:$0xff]
    %v63 = vld [vmem:[%s1 + $0x158] sm:$0xff]
    %v64 = vld [vmem:[%s1 + $0x160] sm:$0xff]
    %v65 = vld [vmem:[%s1 + $0x168] sm:$0xff]
    %v66 = vld [vmem:[%s1 + $0x170] sm:$0xff]
    %v67 = vld [vmem:[%s1 + $0x178] sm:$0xff]
    %v68 = vld [vmem:[%s1 + $0x180] sm:$0xff]
    %v69 = vld [vmem:[%s1 + $0x188] sm:$0xff]
    %v70 = vld [vmem:[%s1 + $0x190] sm:$0xff]
    %v71 = vld [vmem:[%s1 + $0x198] sm:$0xff]
    %v72 = vld [vmem:[%s1 + $0x1a0] sm:$0xff]
    %v73 = vld [vmem:[%s1 + $0x1a8] sm:$0xff]
    %v74 = vld [vmem:[%s1 + $0x1b0] sm:$0xff]
    %v75 = vld [vmem:[%s1 + $0x1b8] sm:$0xff]
    %v76 = vld [vmem:[%s1 + $0x1c0] sm:$0xff]
    %v77 = vld [vmem:[%s1 + $0x1c8] sm:$0xff]
    %v78 = vld [vmem:[%s1 + $0x1d0] sm:$0xff]
    %v79 = vld [vmem:[%s1 + $0x1d8] sm:$0xff]
    %v80 = vld [vmem:[%s1 + $0x1e0] sm:$0xff]
    %v81 = vld [vmem:[%s1 + $0x1e8] sm:$0xff]
    %v82 = vld [vmem:[%s1 + $0x1f0] sm:$0xff]
    %v83 = vld [vmem:[%s1 + $0x1f8] sm:$0xff]
    %v84 = vld [vmem:[%s1 + $0x200] sm:$0xff]
    %v85 = vld [vmem:[%s1 + $0x208] sm:$0xff]
    %v86 = vld [vmem:[%s1 + $0x210] sm:$0xff]
    %v87 = vld [vmem:[%s1 + $0x218] sm:$0xff]
    %v88 = vld [vmem:[%s1 + $0x220] sm:$0xff]
    %v89 = vld [vmem:[%s1 + $0x228] sm:$0xff]
    %v90 = vld [vmem:[%s1 + $0x230] sm:$0xff]
    %v91 = vld [vmem:[%s1 + $0x238] sm:$0xff]
    %v92 = vld [vmem:[%s1 + $0x240] sm:$0xff]
    %v93 = vld [vmem:[%s1 + $0x248] sm:$0xff]
    %v94 = vld [vmem:[%s1 + $0x250] sm:$0xff]
    %v95 = vld [vmem:[%s1 + $0x258] sm:$0xff]
    %v96 = vld [vmem:[%s1 + $0x260] sm:$0xff]
    %v97 = vld [vmem:[%s1 + $0x268] sm:$0xff]
    %v98 = vld [vmem:[%s1 + $0x270] sm:$0xff]
    %v99 = vld [vmem:[%s1 + $0x278] sm:$0xff]
    %v100 = vld [vmem:[%s1 + $0x280] sm:$0xff]
    %v101 = vld [vmem:[%s1 + $0x288] sm:$0xff]
    %v102 = vld [vmem:[%s1 + $0x290] sm:$0xff]
    %v103 = vld [vmem:[%s1 + $0x298] sm:$0xff]
    %v104 = vld [vmem:[%s1 + $0x2a0] sm:$0xff]
    %v105 = vld [vmem:[%s1 + $0x2a8] sm:$0xff]
    %v106 = vld [vmem:[%s1 + $0x2b0] sm:$0xff]
    %v107 = vld [vmem:[%s1 + $0x2b8] sm:$0xff]
    %v108 = vld [vmem:[%s1 + $0x2c0] sm:$0xff]
    %v109 = vld [vmem:[%s1 + $0x2c8] sm:$0xff]
    %v110 = vld [vmem:[%s1 + $0x2d0] sm:$0xff]
    %v111 = vld [vmem:[%s1 + $0x2d8] sm:$0xff]
    %v112 = vld [vmem:[%s1 + $0x2e0] sm:$0xff]
    %v113 = vld [vmem:[%s1 + $0x2e8] sm:$0xff]
    %v114 = vld [vmem:[%s1 + $0x2f0] sm:$0xff]
    %v115 = vld [vmem:[%s1 + $0x2f8] sm:$0xff]
    %v116 = vld [vmem:[%s1 + $0x300] sm:$0xff]
    %v117 = vld [vmem:[%s1 + $0x308] sm:$0xff]
    %v118 = vld [vmem:[%s1 + $0x310] sm:$0xff]
    %v119 = vld [vmem:[%s1 + $0x318] sm:$0xff]
    %v120 = vld [vmem:[%s1 + $0x320] sm:$0xff]
    %v121 = vld [vmem:[%s1 + $0x328] sm:$0xff]
    %v122 = vld [vmem:[%s1 + $0x330] sm:$0xff]
    %v123 = vld [vmem:[%s1 + $0x338] sm:$0xff]
    %v124 = vld [vmem:[%s1 + $0x340] sm:$0xff]
    %v125 = vld [vmem:[%s1 + $0x348] sm:$0xff]
    %v126 = vld [vmem:[%s1 + $0x350] sm:$0xff]
    %v127 = vld [vmem:[%s1 + $0x358] sm:$0xff]
    %v128 = vld [vmem:[%s1 + $0x360] sm:$0xff]
    %v129 = vld [vmem:[%s1 + $0x368] sm:$0xff]
    %v130 = vld [vmem:[%s1 + $0x370] sm:$0xff]
    %v131 = vld [vmem:[%s1 + $0x378] sm:$0xff]
    %v132 = vld [vmem:[%s1 + $0x380] sm:$0xff]
    %v133 = vld [vmem:[%s1 + $0x388] sm:$0xff]
    %v134 = vld [vmem:[%s1 + $0x390] sm:$0xff]
    %v135 = vld [vmem:[%s1 + $0x398] sm:$0xff]
    %v136 = vld [vmem:[%s1 + $0x3a0] sm:$0xff]
    %v137 = vld [vmem:[%s1 + $0x3a8] sm:$0xff]
    %v138 = vld [vmem:[%s1 + $0x3b0] sm:$0xff]
    %v139 = vld [vmem:[%s1 + $0x3b8] sm:$0xff]
    %v140 = vld [vmem:[%s1 + $0x3c0] sm:$0xff]
    %v141 = vld [vmem:[%s1 + $0x3c8] sm:$0xff]
    %v142 = vld [vmem:[%s1 + $0x3d0] sm:$0xff]
    %v143 = vld [vmem:[%s1 + $0x3d8] sm:$0xff]
    %v144 = vld [vmem:[%s1 + $0x3e0] sm:$0xff]
    %v145 = vld [vmem:[%s1 + $0x3e8] sm:$0xff]
    %v146 = vld [vmem:[%s1 + $0x3f0] sm:$0xff]
    %v147 = vld [vmem:[%s1 + $0x3f8] sm:$0xff]
    %v150 = vcombine.high %v18, %v18
    %v152 = vunpack.c.l.s4 1983009808
    %v153 = vunpack.c.0.s8 %v152
    %v154 = vlaneseq
    %v155 = vshrl.u32 %v154, 7
    %v156 = vsub.s32 %v153, %v155
    %v157 = vrot.slane %v18, %v156
    %v159 = vunpack.c.l.s4 1983009808
    %v160 = vunpack.c.0.s8 %v159
    %v161 = vlaneseq
    %v162 = vshrl.u32 %v161, 7
    %v163 = vsub.s32 %v160, %v162
    %v164 = vrot.slane %v150, %v163
    %v165 = vcombine.high %v157, %v157
    %v166 = vcombine.high %v164, %v164
    %v167 = vcombine.high %v19, %v19
    %v169 = vunpack.c.l.s4 1983009808
    %v170 = vunpack.c.0.s8 %v169
    %v171 = vlaneseq
    %v172 = vshrl.u32 %v171, 7
    %v173 = vsub.s32 %v170, %v172
    %v174 = vrot.slane %v19, %v173
    %v176 = vunpack.c.l.s4 1983009808
    %v177 = vunpack.c.0.s8 %v176
    %v178 = vlaneseq
    %v179 = vshrl.u32 %v178, 7
    %v180 = vsub.s32 %v177, %v179
    %v181 = vrot.slane %v167, %v180
    %v182 = vcombine.high %v174, %v174
    %v183 = vcombine.high %v181, %v181
    %192 = vmatprep.subr.mxu0 0.0
    %193 = vmatpush1.msra.mxu0 %v35
    %194 = vmatprep.subr.mxu0 0.0
    %195 = vmatpush1.msra.mxu0 %v34
    %196 = vmatprep.subr.mxu0 0.0
    %197 = vmatpush1.msra.mxu0 %v33
    %198 = vmatprep.subr.mxu0 0.0
    %199 = vmatpush1.msra.mxu0 %v32
    %200 = vmatprep.subr.mxu0 0.0
    %201 = vmatpush1.msra.mxu0 %v31
    %202 = vmatprep.subr.mxu0 0.0
    %203 = vmatpush1.msra.mxu0 %v30
    %204 = vmatprep.subr.mxu0 0.0
    %205 = vmatpush1.msra.mxu0 %v29
    %206 = vmatprep.subr.mxu0 0.0
    %207 = vmatpush1.msra.mxu0 %v28
    %208 = vmatprep.subr.mxu0 0.0
    %209 = vmatpush1.msra.mxu0 %v27
    %210 = vmatprep.subr.mxu0 0.0
    %211 = vmatpush1.msra.mxu0 %v26
    %212 = vmatprep.subr.mxu0 0.0
    %213 = vmatpush1.msra.mxu0 %v25
    %214 = vmatprep.subr.mxu0 0.0
    %215 = vmatpush1.msra.mxu0 %v24
    %216 = vmatprep.subr.mxu0 0.0
    %217 = vmatpush1.msra.mxu0 %v23
    %218 = vmatprep.subr.mxu0 0.0
    %219 = vmatpush1.msra.mxu0 %v22
    %220 = vmatprep.subr.mxu0 0.0
    %221 = vmatpush1.msra.mxu0 %v21
    %222 = vmatprep.subr.mxu0 0.0
    %223 = vmatpush1.msra.mxu0 %v20
    %224 = vmatprep.subr.mxu0 0.0
    %225 = vmatpush2.msra.mxu0 %v51
    %226 = vmatprep.subr.mxu0 0.0
    %227 = vmatpush2.msra.mxu0 %v50
    %228 = vmatprep.subr.mxu0 0.0
    %229 = vmatpush2.msra.mxu0 %v49
    %230 = vmatprep.subr.mxu0 0.0
    %231 = vmatpush2.msra.mxu0 %v48
    %232 = vmatprep.subr.mxu0 0.0
    %233 = vmatpush2.msra.mxu0 %v47
    %234 = vmatprep.subr.mxu0 0.0
    %235 = vmatpush2.msra.mxu0 %v46
    %236 = vmatprep.subr.mxu0 0.0
    %237 = vmatpush2.msra.mxu0 %v45
    %238 = vmatprep.subr.mxu0 0.0
    %239 = vmatpush2.msra.mxu0 %v44
    %240 = vmatprep.subr.mxu0 0.0
    %241 = vmatpush2.msra.mxu0 %v43
    %242 = vmatprep.subr.mxu0 0.0
    %243 = vmatpush2.msra.mxu0 %v42
    %244 = vmatprep.subr.mxu0 0.0
    %245 = vmatpush2.msra.mxu0 %v41
    %246 = vmatprep.subr.mxu0 0.0
    %247 = vmatpush2.msra.mxu0 %v40
    %248 = vmatprep.subr.mxu0 0.0
    %249 = vmatpush2.msra.mxu0 %v39
    %250 = vmatprep.subr.mxu0 0.0
    %251 = vmatpush2.msra.mxu0 %v38
    %252 = vmatprep.subr.mxu0 0.0
    %253 = vmatpush2.msra.mxu0 %v37
    %254 = vmatprep.subr.mxu0 0.0
    %255 = vmatpush2.msra.mxu0 %v36
    %256 = vmatprep.mubr.f32.mxu0 %v165
    %257 = vmatmul.mubr.f32.gmra.mxu0 %v157
    %v258 = vpop.f32.mrf.mxu0
    %v259 = vadd.f32 0.0, %v258
    %v260 = vpop.f32.mrf.mxu0
    %261 = vdwg.mxu0
    %262 = vmatprep.subr.mxu0 0.0
    %263 = vmatpush1.msra.mxu0 %v67
    %264 = vmatprep.subr.mxu0 0.0
    %265 = vmatpush1.msra.mxu0 %v66
    %266 = vmatprep.subr.mxu0 0.0
    %267 = vmatpush1.msra.mxu0 %v65
    %268 = vmatprep.subr.mxu0 0.0
    %269 = vmatpush1.msra.mxu0 %v64
    %270 = vmatprep.subr.mxu0 0.0
    %271 = vmatpush1.msra.mxu0 %v63
    %272 = vmatprep.subr.mxu0 0.0
    %273 = vmatpush1.msra.mxu0 %v62
    %274 = vmatprep.subr.mxu0 0.0
    %275 = vmatpush1.msra.mxu0 %v61
    %276 = vmatprep.subr.mxu0 0.0
    %277 = vmatpush1.msra.mxu0 %v60
    %278 = vmatprep.subr.mxu0 0.0
    %279 = vmatpush1.msra.mxu0 %v59
    %280 = vmatprep.subr.mxu0 0.0
    %281 = vmatpush1.msra.mxu0 %v58
    %282 = vmatprep.subr.mxu0 0.0
    %283 = vmatpush1.msra.mxu0 %v57
    %284 = vmatprep.subr.mxu0 0.0
    %285 = vmatpush1.msra.mxu0 %v56
    %286 = vmatprep.subr.mxu0 0.0
    %287 = vmatpush1.msra.mxu0 %v55
    %288 = vmatprep.subr.mxu0 0.0
    %289 = vmatpush1.msra.mxu0 %v54
    %290 = vmatprep.subr.mxu0 0.0
    %291 = vmatpush1.msra.mxu0 %v53
    %292 = vmatprep.subr.mxu0 0.0
    %293 = vmatpush1.msra.mxu0 %v52
    %294 = vmatprep.subr.mxu0 0.0
    %295 = vmatpush2.msra.mxu0 %v83
    %296 = vmatprep.subr.mxu0 0.0
    %297 = vmatpush2.msra.mxu0 %v82
    %298 = vmatprep.subr.mxu0 0.0
    %299 = vmatpush2.msra.mxu0 %v81
    %300 = vmatprep.subr.mxu0 0.0
    %301 = vmatpush2.msra.mxu0 %v80
    %302 = vmatprep.subr.mxu0 0.0
    %303 = vmatpush2.msra.mxu0 %v79
    %304 = vmatprep.subr.mxu0 0.0
    %305 = vmatpush2.msra.mxu0 %v78
    %306 = vmatprep.subr.mxu0 0.0
    %307 = vmatpush2.msra.mxu0 %v77
    %308 = vmatprep.subr.mxu0 0.0
    %309 = vmatpush2.msra.mxu0 %v76
    %310 = vmatprep.subr.mxu0 0.0
    %311 = vmatpush2.msra.mxu0 %v75
    %312 = vmatprep.subr.mxu0 0.0
    %313 = vmatpush2.msra.mxu0 %v74
    %314 = vmatprep.subr.mxu0 0.0
    %315 = vmatpush2.msra.mxu0 %v73
    %316 = vmatprep.subr.mxu0 0.0
    %317 = vmatpush2.msra.mxu0 %v72
    %318 = vmatprep.subr.mxu0 0.0
    %319 = vmatpush2.msra.mxu0 %v71
    %320 = vmatprep.subr.mxu0 0.0
    %321 = vmatpush2.msra.mxu0 %v70
    %322 = vmatprep.subr.mxu0 0.0
    %323 = vmatpush2.msra.mxu0 %v69
    %324 = vmatprep.subr.mxu0 0.0
    %325 = vmatpush2.msra.mxu0 %v68
    %326 = vmatprep.mubr.f32.mxu0 %v166
    %327 = vmatmul.mubr.f32.gmra.mxu0 %v164
    %v328 = vpop.f32.mrf.mxu0
    %v329 = vadd.f32 %v259, %v328
    %v330 = vpop.f32.mrf.mxu0
    %331 = vdwg.mxu0
    %332 = vmatprep.subr.mxu0 0.0
    %333 = vmatpush1.msra.mxu0 %v99
    %334 = vmatprep.subr.mxu0 0.0
    %335 = vmatpush1.msra.mxu0 %v98
    %336 = vmatprep.subr.mxu0 0.0
    %337 = vmatpush1.msra.mxu0 %v97
    %338 = vmatprep.subr.mxu0 0.0
    %339 = vmatpush1.msra.mxu0 %v96
    %340 = vmatprep.subr.mxu0 0.0
    %341 = vmatpush1.msra.mxu0 %v95
    %342 = vmatprep.subr.mxu0 0.0
    %343 = vmatpush1.msra.mxu0 %v94
    %344 = vmatprep.subr.mxu0 0.0
    %345 = vmatpush1.msra.mxu0 %v93
    %346 = vmatprep.subr.mxu0 0.0
    %347 = vmatpush1.msra.mxu0 %v92
    %348 = vmatprep.subr.mxu0 0.0
    %349 = vmatpush1.msra.mxu0 %v91
    %350 = vmatprep.subr.mxu0 0.0
    %351 = vmatpush1.msra.mxu0 %v90
    %352 = vmatprep.subr.mxu0 0.0
    %353 = vmatpush1.msra.mxu0 %v89
    %354 = vmatprep.subr.mxu0 0.0
    %355 = vmatpush1.msra.mxu0 %v88
    %356 = vmatprep.subr.mxu0 0.0
    %357 = vmatpush1.msra.mxu0 %v87
    %358 = vmatprep.subr.mxu0 0.0
    %359 = vmatpush1.msra.mxu0 %v86
    %360 = vmatprep.subr.mxu0 0.0
    %361 = vmatpush1.msra.mxu0 %v85
    %362 = vmatprep.subr.mxu0 0.0
    %363 = vmatpush1.msra.mxu0 %v84
    %364 = vmatprep.subr.mxu0 0.0
    %365 = vmatpush2.msra.mxu0 %v115
    %366 = vmatprep.subr.mxu0 0.0
    %367 = vmatpush2.msra.mxu0 %v114
    %368 = vmatprep.subr.mxu0 0.0
    %369 = vmatpush2.msra.mxu0 %v113
    %370 = vmatprep.subr.mxu0 0.0
    %371 = vmatpush2.msra.mxu0 %v112
    %372 = vmatprep.subr.mxu0 0.0
    %373 = vmatpush2.msra.mxu0 %v111
    %374 = vmatprep.subr.mxu0 0.0
    %375 = vmatpush2.msra.mxu0 %v110
    %376 = vmatprep.subr.mxu0 0.0
    %377 = vmatpush2.msra.mxu0 %v109
    %378 = vmatprep.subr.mxu0 0.0
    %379 = vmatpush2.msra.mxu0 %v108
    %380 = vmatprep.subr.mxu0 0.0
    %381 = vmatpush2.msra.mxu0 %v107
    %382 = vmatprep.subr.mxu0 0.0
    %383 = vmatpush2.msra.mxu0 %v106
    %384 = vmatprep.subr.mxu0 0.0
    %385 = vmatpush2.msra.mxu0 %v105
    %386 = vmatprep.subr.mxu0 0.0
    %387 = vmatpush2.msra.mxu0 %v104
    %388 = vmatprep.subr.mxu0 0.0
    %389 = vmatpush2.msra.mxu0 %v103
    %390 = vmatprep.subr.mxu0 0.0
    %391 = vmatpush2.msra.mxu0 %v102
    %392 = vmatprep.subr.mxu0 0.0
    %393 = vmatpush2.msra.mxu0 %v101
    %394 = vmatprep.subr.mxu0 0.0
    %395 = vmatpush2.msra.mxu0 %v100
    %396 = vmatprep.mubr.f32.mxu0 %v182
    %397 = vmatmul.mubr.f32.gmra.mxu0 %v174
    %v398 = vpop.f32.mrf.mxu0
    %v399 = vadd.f32 %v329, %v398
    %v400 = vpop.f32.mrf.mxu0
    %401 = vdwg.mxu0
    %402 = vmatprep.subr.mxu0 0.0
    %403 = vmatpush1.msra.mxu0 %v131
    %404 = vmatprep.subr.mxu0 0.0
    %405 = vmatpush1.msra.mxu0 %v130
    %406 = vmatprep.subr.mxu0 0.0
    %407 = vmatpush1.msra.mxu0 %v129
    %408 = vmatprep.subr.mxu0 0.0
    %409 = vmatpush1.msra.mxu0 %v128
    %410 = vmatprep.subr.mxu0 0.0
    %411 = vmatpush1.msra.mxu0 %v127
    %412 = vmatprep.subr.mxu0 0.0
    %413 = vmatpush1.msra.mxu0 %v126
    %414 = vmatprep.subr.mxu0 0.0
    %415 = vmatpush1.msra.mxu0 %v125
    %416 = vmatprep.subr.mxu0 0.0
    %417 = vmatpush1.msra.mxu0 %v124
    %418 = vmatprep.subr.mxu0 0.0
    %419 = vmatpush1.msra.mxu0 %v123
    %420 = vmatprep.subr.mxu0 0.0
    %421 = vmatpush1.msra.mxu0 %v122
    %422 = vmatprep.subr.mxu0 0.0
    %423 = vmatpush1.msra.mxu0 %v121
    %424 = vmatprep.subr.mxu0 0.0
    %425 = vmatpush1.msra.mxu0 %v120
    %426 = vmatprep.subr.mxu0 0.0
    %427 = vmatpush1.msra.mxu0 %v119
    %428 = vmatprep.subr.mxu0 0.0
    %429 = vmatpush1.msra.mxu0 %v118
    %430 = vmatprep.subr.mxu0 0.0
    %431 = vmatpush1.msra.mxu0 %v117
    %432 = vmatprep.subr.mxu0 0.0
    %433 = vmatpush1.msra.mxu0 %v116
    %434 = vmatprep.subr.mxu0 0.0
    %435 = vmatpush2.msra.mxu0 %v147
    %436 = vmatprep.subr.mxu0 0.0
    %437 = vmatpush2.msra.mxu0 %v146
    %438 = vmatprep.subr.mxu0 0.0
    %439 = vmatpush2.msra.mxu0 %v145
    %440 = vmatprep.subr.mxu0 0.0
    %441 = vmatpush2.msra.mxu0 %v144
    %442 = vmatprep.subr.mxu0 0.0
    %443 = vmatpush2.msra.mxu0 %v143
    %444 = vmatprep.subr.mxu0 0.0
    %445 = vmatpush2.msra.mxu0 %v142
    %446 = vmatprep.subr.mxu0 0.0
    %447 = vmatpush2.msra.mxu0 %v141
    %448 = vmatprep.subr.mxu0 0.0
    %449 = vmatpush2.msra.mxu0 %v140
    %450 = vmatprep.subr.mxu0 0.0
    %451 = vmatpush2.msra.mxu0 %v139
    %452 = vmatprep.subr.mxu0 0.0
    %453 = vmatpush2.msra.mxu0 %v138
    %454 = vmatprep.subr.mxu0 0.0
    %455 = vmatpush2.msra.mxu0 %v137
    %456 = vmatprep.subr.mxu0 0.0
    %457 = vmatpush2.msra.mxu0 %v136
    %458 = vmatprep.subr.mxu0 0.0
    %459 = vmatpush2.msra.mxu0 %v135
    %460 = vmatprep.subr.mxu0 0.0
    %461 = vmatpush2.msra.mxu0 %v134
    %462 = vmatprep.subr.mxu0 0.0
    %463 = vmatpush2.msra.mxu0 %v133
    %464 = vmatprep.subr.mxu0 0.0
    %465 = vmatpush2.msra.mxu0 %v132
    %466 = vmatprep.mubr.f32.mxu0 %v183
    %467 = vmatmul.mubr.f32.gmra.mxu0 %v181
    %v468 = vpop.f32.mrf.mxu0
    %v469 = vadd.f32 %v399, %v468
    %v470 = vpop.f32.mrf.mxu0
    %471 = vdwg.mxu0
    %vm472 = vcmask 123904
    %v473 = vsel %vm472, %v469, -inf
    %474 = vmax.xlane.f32.xlu0 %v473
    %v475 = vpop.xlane.xlu0 %474
    %v476 = vsub.f32 %v469, %v475
    %v477 = vmul.f32 %v476, 1.442695
    %v478 = vpow.pop %v477
    %v479 = vsel %vm472, %v478, 0.0
    %480 = vadd.xlane.f32.xlu0 %v479
    %v481 = vpop.xlane.xlu0 %480
    %v482 = vrcp.pop %v481
    %v483 = vmul.f32 %v478, %v482
    %v484 = vld [vmem:[%s2] sm:$0xff]
    %v485 = vld [vmem:[%s2 + $0x8] sm:$0xff]
    %v486 = vld [vmem:[%s3] sm:$0x1]
    %v488 = vlaneseq
    %v489 = vshrl.u32 %v488, 7
    %v490 = vsub.s32 0, %v489
    %v491 = vrot.slane %v486, %v490
    %vm493 = vcmask 130048
    %v495 = vsel %vm493, %v483, 0
    %497 = vmatprep.subr.mxu0 0.0
    %498 = vmatpush1.msra.mxu0 0.0
    %499 = vmatprep.subr.mxu0 0.0
    %500 = vmatpush1.msra.mxu0 0.0
    %501 = vmatprep.subr.mxu0 0.0
    %502 = vmatpush1.msra.mxu0 0.0
    %503 = vmatprep.subr.mxu0 0.0
    %504 = vmatpush1.msra.mxu0 0.0
    %505 = vmatprep.subr.mxu0 0.0
    %506 = vmatpush1.msra.mxu0 0.0
    %507 = vmatprep.subr.mxu0 0.0
    %508 = vmatpush1.msra.mxu0 0.0
    %509 = vmatprep.subr.mxu0 0.0
    %510 = vmatpush1.msra.mxu0 0.0
    %511 = vmatprep.subr.mxu0 0.0
    %512 = vmatpush1.msra.mxu0 0.0
    %513 = vmatprep.subr.mxu0 0.0
    %514 = vmatpush1.msra.mxu0 0.0
    %515 = vmatprep.subr.mxu0 0.0
    %516 = vmatpush1.msra.mxu0 0.0
    %517 = vmatprep.subr.mxu0 0.0
    %518 = vmatpush1.msra.mxu0 0.0
    %519 = vmatprep.subr.mxu0 0.0
    %520 = vmatpush1.msra.mxu0 0.0
    %521 = vmatprep.subr.mxu0 0.0
    %522 = vmatpush1.msra.mxu0 0.0
    %523 = vmatprep.subr.mxu0 0.0
    %524 = vmatpush1.msra.mxu0 0.0
    %525 = vmatprep.subr.mxu0 0.0
    %526 = vmatpush1.msra.mxu0 %v485
    %527 = vmatprep.subr.mxu0 0.0
    %528 = vmatpush1.msra.mxu0 %v484
    %529 = vmatprep.subr.mxu0 0.0
    %530 = vmatpush2.msra.mxu0 0.0
    %531 = vmatprep.subr.mxu0 0.0
    %532 = vmatpush2.msra.mxu0 0.0
    %533 = vmatprep.subr.mxu0 0.0
    %534 = vmatpush2.msra.mxu0 0.0
    %535 = vmatprep.subr.mxu0 0.0
    %536 = vmatpush2.msra.mxu0 0.0
    %537 = vmatprep.subr.mxu0 0.0
    %538 = vmatpush2.msra.mxu0 0.0
    %539 = vmatprep.subr.mxu0 0.0
    %540 = vmatpush2.msra.mxu0 0.0
    %541 = vmatprep.subr.mxu0 0.0
    %542 = vmatpush2.msra.mxu0 0.0
    %543 = vmatprep.subr.mxu0 0.0
    %544 = vmatpush2.msra.mxu0 0.0
    %545 = vmatprep.subr.mxu0 0.0
    %546 = vmatpush2.msra.mxu0 0.0
    %547 = vmatprep.subr.mxu0 0.0
    %548 = vmatpush2.msra.mxu0 0.0
    %549 = vmatprep.subr.mxu0 0.0
    %550 = vmatpush2.msra.mxu0 0.0
    %551 = vmatprep.subr.mxu0 0.0
    %552 = vmatpush2.msra.mxu0 0.0
    %553 = vmatprep.subr.mxu0 0.0
    %554 = vmatpush2.msra.mxu0 0.0
    %555 = vmatprep.subr.mxu0 0.0
    %556 = vmatpush2.msra.mxu0 0.0
    %557 = vmatprep.subr.mxu0 0.0
    %558 = vmatpush2.msra.mxu0 0.0
    %559 = vmatprep.subr.mxu0 0.0
    %560 = vmatpush2.msra.mxu0 0.0
    %561 = vmatprep.mubr.f32.mxu0 0.0
    %562 = vmatmul.mubr.f32.gmra.mxu0 %v495
    %v563 = vpop.f32.mrf.mxu0
    %v564 = vadd.f32 %v491, %v563
    %v565 = vpop.f32.mrf.mxu0
    %566 = vdwg.mxu0
    %567 = vst [vmem:[#allocation2] sm:$0x3] %v564
    // Predicated region
    $region18: #{run.1} parent=1 // pred_check
      _
    $region19: #{run.1} parent=1 // pred_check_branch
      %569 = sbr.rel (0) target = $region21
    $region20: #{run.1} parent=1 // pred_region
      %s571 = ssub.s32 32, 32
      %572 = vsyncadd [#allocation3], %s571
      %s574 = sshll.u32 [#allocation2], 4
      %s575 = int_to_ptr.vmem [resolvable:$true] %s574
      %577 = dma.vmem_to_hbm [thread:$0]  %s575, 32, %s4, [#allocation3]
    $region21: #{run.1} parent=1 // pred_fallthru
      _
    // Predicated region
    $region22: #{run.1} parent=1 // pred_check
      _
    $region23: #{run.1} parent=1 // pred_check_branch
      %579 = sbr.rel (0) target = $region25
    $region24: #{run.1} parent=1 // pred_region
      %580 = dma.done [#allocation3], 32
    $region25: #{run.1} parent=1 // pred_fallthru
      _
    %581 = vsyncpa [#allocation3], 1

</llo_original>
